<compile_context>
chip_gen: v5e
topology: v5e:2x2
jax: 0.10.0
libtpu: 0.0.40
codegen_flags: <defaults>
</compile_context>

<pallas_src>
import functools

import jax
import jax.numpy as jnp
from jax.experimental import pallas as pl
from jax.experimental.pallas import tpu as pltpu


def _round_up(a, b):
    return ((a + b - 1) // b) * b


def _maxpool_kernel(x_ref, o_ref, *, kernel_size):
    # x_ref: (K, ROW_BLOCK, LOUT_BLOCK)  window-shift k on the leading axis,
    #        rows on sublanes, pooled output positions lane-minor.
    # o_ref: (ROW_BLOCK, LOUT_BLOCK)
    acc = x_ref[0]
    for k in range(1, kernel_size):           # unrolled: K-1 full-width VPU vmax
        acc = jnp.maximum(acc, x_ref[k])
    o_ref[...] = acc


def my_maxpool1d_pad_same(x, kernel_size):
    """Equivalent of MyMaxPool1dPadSame(kernel_size)(x) for x of shape (N, C, L)."""
    K = int(kernel_size)
    N, C, L = x.shape

    # forward(): pad computed with stride=1 -> total pad = K-1 zeros.
    pad_left = (K - 1) // 2
    L_pad = L + K - 1
    L_out = (L_pad - K) // K + 1              # MaxPool1d default stride == K

    rows = N * C
    itemsize = jnp.dtype(x.dtype).itemsize
    sublane_mult = 8 * max(1, 4 // itemsize)  # 8 for f32, 16 for bf16, 32 for i8
    LANE = 128

    # Lane-dense output: pad L_out up to a multiple of 128 and tile it.
    L_out_128 = _round_up(L_out, LANE)
    LOUT_BLOCK = min(L_out_128, 512)          # multiple of 128
    L_out_p = _round_up(L_out, LOUT_BLOCK)

    # Row block: as large as a ~4 MiB input block allows (double-buffered input
    # + output then stays well under VMEM scoped defaults on v5e/v6e/v7x).
    rows_su = _round_up(rows, sublane_mult)
    budget_bytes = 4 * 1024 * 1024
    max_rb = max(
        sublane_mult,
        (budget_bytes // (K * LOUT_BLOCK * itemsize)) // sublane_mult * sublane_mult,
    )
    ROW_BLOCK = min(rows_su, max_rb)
    # Keep >= 2 parallel grid steps when possible (v7x: shard across both TCs).
    if ROW_BLOCK >= rows_su and (L_out_p // LOUT_BLOCK) < 2 and rows_su >= 2 * sublane_mult:
        ROW_BLOCK = _round_up((rows_su + 1) // 2, sublane_mult)
    rows_p = _round_up(rows, ROW_BLOCK)

    # Single fused XLA pad + reshape + transpose producing the kernel layout:
    # (K, rows_p, L_out_p) with the pooled position lane-minor.  Only the first
    # L_out_p*K padded elements are kept (trailing data dropped, like PyTorch).
    x2 = x.reshape(rows, L)
    total_len = L_out_p * K
    tail = max(total_len - pad_left - L, 0)
    xp = jnp.pad(x2, ((0, rows_p - rows), (pad_left, tail)))[:, :total_len]
    xw = jnp.transpose(xp.reshape(rows_p, L_out_p, K), (2, 0, 1))

    grid = (rows_p // ROW_BLOCK, L_out_p // LOUT_BLOCK)
    out = pl.pallas_call(
        functools.partial(_maxpool_kernel, kernel_size=K),
        out_shape=jax.ShapeDtypeStruct((rows_p, L_out_p), x.dtype),
        grid_spec=pltpu.PrefetchScalarGridSpec(
            num_scalar_prefetch=0,
            grid=grid,
            in_specs=[pl.BlockSpec((K, ROW_BLOCK, LOUT_BLOCK), lambda i, j: (0, i, j))],
            out_specs=pl.BlockSpec((ROW_BLOCK, LOUT_BLOCK), lambda i, j: (i, j)),
        ),
        compiler_params=pltpu.CompilerParams(
            dimension_semantics=("parallel", "parallel"),
            vmem_limit_bytes=32 * 1024 * 1024,
        ),
    )(xw)

    return out[:rows, :L_out].reshape(N, C, L_out)


def _reference(x, kernel_size):
    """Pure-JAX reference mirroring the PyTorch forward."""
    K = int(kernel_size)
    N, C, L = x.shape
    pad_left = (K - 1) // 2
    pad_right = (K - 1) - pad_left
    xp = jnp.pad(x, ((0, 0), (0, 0), (pad_left, pad_right)))
    L_out = (xp.shape[-1] - K) // K + 1
    xw = xp[..., : L_out * K].reshape(N, C, L_out, K)
    return jnp.max(xw, axis=-1)


if __name__ == "__main__":
    # MyMaxPool1dPadSame has no learnable parameters; only kernel_size config.
    kernel_size = 3
    key = jax.random.PRNGKey(0)
    # Small shapes consistent with a 1D conv pipeline: (batch, channels, length)
    x = jax.random.normal(key, (2, 4, 16), dtype=jnp.float32)

    out = my_maxpool1d_pad_same(x, kernel_size)
    out = jax.block_until_ready(out)

    ref = _reference(x, kernel_size)
    assert out.shape == ref.shape, (out.shape, ref.shape)
    assert jnp.allclose(out, ref), "Pallas output mismatch vs reference"

    print("KERNEL_OK")
</pallas_src>

<mosaic_0001>
module attributes {stable_mosaic.version = 11 : i64} {
  func.func @_maxpool_kernel(%arg0: i32, %arg1: i32, %arg2: memref<3x8x128xf32, #tpu.memory_space<vmem>>, %arg3: memref<8x128xf32, #tpu.memory_space<vmem>>) attributes {dimension_semantics = [#tpu.dimension_semantics<parallel>, #tpu.dimension_semantics<parallel>], iteration_bounds = array<i64: 1, 1>, scalar_prefetch = 0 : i64, scratch_operands = 0 : i64, tpu.core_type = #tpu.core_type<tc>, window_params = [{transform_indices = @transform_0, window_bounds = array<i64: 3, 8, 128>}, {transform_indices = @transform_1, window_bounds = array<i64: 8, 128>}]} {
    %c0 = arith.constant 0 : index
    %c0_0 = arith.constant 0 : index
    %c0_1 = arith.constant 0 : index
    %0 = vector.load %arg2[%c0, %c0_0, %c0_1] : memref<3x8x128xf32, #tpu.memory_space<vmem>>, vector<1x8x128xf32>
    %1 = vector.shape_cast %0 : vector<1x8x128xf32> to vector<8x128xf32>
    %c1 = arith.constant 1 : index
    %c0_2 = arith.constant 0 : index
    %c0_3 = arith.constant 0 : index
    %2 = vector.load %arg2[%c1, %c0_2, %c0_3] : memref<3x8x128xf32, #tpu.memory_space<vmem>>, vector<1x8x128xf32>
    %3 = vector.shape_cast %2 : vector<1x8x128xf32> to vector<8x128xf32>
    %4 = arith.maximumf %1, %3 : vector<8x128xf32>
    %c2 = arith.constant 2 : index
    %c0_4 = arith.constant 0 : index
    %c0_5 = arith.constant 0 : index
    %5 = vector.load %arg2[%c2, %c0_4, %c0_5] : memref<3x8x128xf32, #tpu.memory_space<vmem>>, vector<1x8x128xf32>
    %6 = vector.shape_cast %5 : vector<1x8x128xf32> to vector<8x128xf32>
    %7 = arith.maximumf %4, %6 : vector<8x128xf32>
    %c0_6 = arith.constant 0 : index
    %c0_7 = arith.constant 0 : index
    %8 = vector.load %arg3[%c0_6, %c0_7] : memref<8x128xf32, #tpu.memory_space<vmem>>, vector<8x128xf32>
    tpu.vector_store %arg3[%c0_6, %c0_7], %7 {strides = array<i32>} : memref<8x128xf32, #tpu.memory_space<vmem>>, vector<8x128xf32>,
    return
  }
  func.func @transform_0(%arg0: i32, %arg1: i32) -> (i32, i32, i32) {
    %c0_i32 = arith.constant 0 : i32
    %c0_i32_0 = arith.constant 0 : i32
    return %c0_i32, %arg0, %arg1 : i32, i32, i32
  }
  func.func @transform_1(%arg0: i32, %arg1: i32) -> (i32, i32) {
    %c0_i32 = arith.constant 0 : i32
    return %arg0, %arg1 : i32, i32
  }
}

</mosaic_0001>

<llo_original>
// kernel: tpu_custom_call.1
$region0: #{tpu_custom_call.1}
  #allocation0 [shape = 'u32[]', space=smem, size = 0x4, offset = 0x4, fixed_abs, tag = 'smem constant byte address 0x4 - core index']
  #allocation1 [shape = 'u32[72,128]{1,0:T(1,128)}', space=vmem, size = 0x9000, scoped, tag = 'internal scratch']
  %s0 = inlined_call_operand.hbm [shape: f32[3,8,128], index: 0, kind: input, shape index: {}]
  %s1 = inlined_call_operand.hbm [shape: f32[8,128], index: 1, kind: output, shape index: {}]
  %s2 = sld [smem:[#allocation0]]
  $region18: #{tpu_custom_call.1} parent=0
    _
  %s4 = ssub.s32 1, %s2
  %s5 = scalar_select 0, %s4, %s2
  $region1: #{tpu_custom_call.1} parent=0
    #allocation2 [shape = 'u8[12288]{0}', space=vmem, size = 0x3000, scoped, tag = 'input window, operand 0, single buffered']
    #allocation3 [shape = 's32[1]{0}', space=sflag, size = 0x4, scoped, tag = 'scoped memory for tpu_custom_call.1']
    #allocation4 [shape = 's32[1]{0}', space=sflag, size = 0x4, scoped, tag = 'scoped memory for tpu_custom_call.1']
    #allocation5 [shape = 'u8[4096]{0}', space=vmem, size = 0x1000, scoped, tag = 'output window, operand 0, single buffered']
    %6 = vsyncpa [#allocation3], 0
    %7 = vsyncpa [#allocation4], 0
    // Predicated region
    $region2: #{tpu_custom_call.1} parent=1 // pred_check
      _
    $region3: #{tpu_custom_call.1} parent=1 // pred_check_branch
      %9 = sbr.rel (0) target = $region5
    $region4: #{tpu_custom_call.1} parent=1 // pred_region
      %11 = vsyncadd [#allocation3], 0
      %s12 = sshll.u32 %s0, 4
      %s13 = int_to_ptr.hbm [resolvable:$true] %s12
      %s14 = sshll.u32 [#allocation2], 4
      %s15 = int_to_ptr.vmem [resolvable:$true] %s14
      %20 = dma.hbm_to_vmem [thread:$0]  %s13, 384, %s15, [#allocation3], 128, 128, 8
    $region5: #{tpu_custom_call.1} parent=1 // pred_fallthru
      _
    // Predicated region
    $region6: #{tpu_custom_call.1} parent=1 // pred_check
      _
    $region7: #{tpu_custom_call.1} parent=1 // pred_check_branch
      %22 = sbr.rel (0) target = $region9
    $region8: #{tpu_custom_call.1} parent=1 // pred_region
      %24 = dma.done [#allocation3], 384
    $region9: #{tpu_custom_call.1} parent=1 // pred_fallthru
      _
    %v25 = vld [vmem:[#allocation2] sm:$0xff]
    %s26 = scalar_lea.vmem [#allocation2], 8
    %v27 = vld [vmem:[%s26] sm:$0xff]
    %v28 = vmax.f32 %v25, %v27
    %s29 = scalar_lea.vmem [#allocation2], 16
    %v30 = vld [vmem:[%s29] sm:$0xff]
    %v31 = vmax.f32 %v28, %v30
    %32 = vst [vmem:[#allocation5] sm:$0xff] %v31
    // Predicated region
    $region10: #{tpu_custom_call.1} parent=1 // pred_check
      _
    $region11: #{tpu_custom_call.1} parent=1 // pred_check_branch
      %34 = sbr.rel (0) target = $region13
    $region12: #{tpu_custom_call.1} parent=1 // pred_region
      %36 = vsyncadd [#allocation4], 0
      %s38 = sshll.u32 [#allocation5], 4
      %s39 = int_to_ptr.vmem [resolvable:$true] %s38
      %s40 = sshll.u32 %s1, 4
      %s41 = int_to_ptr.hbm [resolvable:$true] %s40
      %43 = dma.vmem_to_hbm [thread:$0]  %s39, 128, %s41, [#allocation4]
    $region13: #{tpu_custom_call.1} parent=1 // pred_fallthru
      _
    // Predicated region
    $region14: #{tpu_custom_call.1} parent=1 // pred_check
      _
    $region15: #{tpu_custom_call.1} parent=1 // pred_check_branch
      %45 = sbr.rel (0) target = $region17
    $region16: #{tpu_custom_call.1} parent=1 // pred_region
      %47 = dma.done [#allocation4], 128
    $region17: #{tpu_custom_call.1} parent=1 // pred_fallthru
      _
    %48 = vsyncpa [#allocation3], 1
    %49 = vsyncpa [#allocation4], 1

</llo_original>
